<compile_context>
chip_gen: v7x
topology: tpu7x:2x2x1
jax: 0.10.0
libtpu: 0.0.40
codegen_flags: <defaults>
</compile_context>

<pallas_src>
import functools

import jax
import jax.numpy as jnp
from jax import lax
from jax.experimental import pallas as pl
from jax.experimental.pallas import tpu as pltpu


def _round_up(x, m):
    return (x + m - 1) // m * m


# -----------------------------------------------------------------------------
# Pass 1: conv-as-GEMM (bf16 MXU operands, f32 accumulation) + global BN moments.
#   p_ref  : (TM, Kp)    bf16  im2col patch rows (K padded to a multiple of 128)
#   w_ref  : (Kp, Coutp) bf16  folded conv weight (constant across the grid)
#   y_ref  : (TM, Coutp) bf16  conv output slab (re-used by pass 2 -> no recompute)
#   s1/s2  : (1, Coutp)  f32   resident sum / sum-of-squares accumulators
# -----------------------------------------------------------------------------
def _conv_stats_kernel(p_ref, w_ref, y_ref, s1_ref, s2_ref):
    @pl.when(pl.program_id(0) == 0)
    def _init():
        s1_ref[...] = jnp.zeros_like(s1_ref)
        s2_ref[...] = jnp.zeros_like(s2_ref)

    acc = jnp.dot(p_ref[...], w_ref[...], preferred_element_type=jnp.float32)
    y_ref[...] = acc.astype(jnp.bfloat16)
    # One-pass moments; zero-padded rows / lanes contribute exactly 0 to both sums.
    # TODO(synk): for very large M switch to mean-shifted / Welford accumulation to avoid
    # cancellation in E[x^2] - E[x]^2.
    s1_ref[...] += jnp.sum(acc, axis=0, keepdims=True)
    s2_ref[...] += jnp.sum(acc * acc, axis=0, keepdims=True)


# -----------------------------------------------------------------------------
# Pass 2: pure elementwise BN affine + ReLU over the bf16 conv slab.
#   Output block is channel-compact (TM, Cout) f32 -> no padded-channel writeback.
# -----------------------------------------------------------------------------
def _bn_relu_kernel(y_ref, scale_ref, shift_ref, o_ref, *, cout):
    y = y_ref[...].astype(jnp.float32)
    z = jnp.maximum(y * scale_ref[...] + shift_ref[...], 0.0)
    o_ref[...] = z[:, :cout]


def conv_bn_relu(x_nchw, w_oihw, gamma, beta, *, stride=1, padding=1, eps=1e-5, tm=256):
    N, Cin, H, W = x_nchw.shape
    Cout, _, KH, KW = w_oihw.shape
    Ho = (H + 2 * padding - KH) // stride + 1
    Wo = (W + 2 * padding - KW) // stride + 1
    K = KH * KW * Cin
    Kp = _round_up(K, 128)                                 # tile-aligned MXU contraction dim
    # 256-wide N tiles when Cout is large (v6e/v7x 256x256 MXU); 128 for small Cout / v5e.
    Coutp = _round_up(Cout, 256 if Cout > 128 else 128)
    M = N * Ho * Wo
    TM = min(tm, _round_up(M, 8))                          # rows per grid step (raise for big layers)
    Mp = _round_up(M, TM)

    # ---- plain-JAX glue: layout change, zero-pad, bf16 cast, one-time bf16 im2col -------------
    x = jnp.transpose(x_nchw, (0, 2, 3, 1))                                     # NHWC
    xp = jnp.pad(x, ((0, 0), (padding, padding), (padding, padding), (0, 0)))
    xp = xp.astype(jnp.bfloat16)                                                # halve HBM bytes
    cols = []
    for kh in range(KH):                                   # static, unrolled (KH*KW slices)
        for kw in range(KW):
            cols.append(xp[:, kh:kh + (Ho - 1) * stride + 1:stride,
                           kw:kw + (Wo - 1) * stride + 1:stride, :])
    patches = jnp.concatenate(cols, axis=-1).reshape(M, K)                      # (M, K) bf16
    patches = jnp.pad(patches, ((0, Mp - M), (0, Kp - K)))                      # zero pad rows/lanes
    # (Cout, Cin, KH, KW) -> (Kp, Coutp): taps folded into the contraction dim, zero padded.
    w = jnp.transpose(w_oihw, (2, 3, 1, 0)).reshape(K, Cout)
    w = jnp.pad(w, ((0, Kp - K), (0, Coutp - Cout))).astype(jnp.bfloat16)

    grid = (Mp // TM,)
    vmem = 32 * 1024 * 1024                                # safe scoped-VMEM cap on v5e/v6e/v7x

    # ---- Pass 1: GEMM + conv slab + global channel sum / sum-of-squares -----------------------
    y_conv, s1, s2 = pl.pallas_call(
        _conv_stats_kernel,
        grid=grid,
        in_specs=[pl.BlockSpec((TM, Kp), lambda i: (i, 0)),
                  pl.BlockSpec((Kp, Coutp), lambda i: (0, 0))],
        out_specs=[pl.BlockSpec((TM, Coutp), lambda i: (i, 0)),
                   pl.BlockSpec((1, Coutp), lambda i: (0, 0)),
                   pl.BlockSpec((1, Coutp), lambda i: (0, 0))],
        out_shape=[jax.ShapeDtypeStruct((Mp, Coutp), jnp.bfloat16),
                   jax.ShapeDtypeStruct((1, Coutp), jnp.float32),
                   jax.ShapeDtypeStruct((1, Coutp), jnp.float32)],
        compiler_params=pltpu.CompilerParams(
            dimension_semantics=("arbitrary",),            # resident S1/S2 accumulators
            vmem_limit_bytes=vmem),
    )(patches, w)
    # TODO(synk): on v7x add a leading parallel core axis with per-core S1/S2 partial outputs
    # (reduced in the wrapper) so the stats pass shards across both TensorCores.

    # ---- tiny per-channel BN math (training-mode batch stats, biased variance) ----------------
    cnt = jnp.float32(M)                                   # true pixel count (pad rows are zero)
    mean = s1 / cnt
    var = jnp.maximum(s2 / cnt - mean * mean, 0.0)
    gamma_p = jnp.pad(gamma.astype(jnp.float32), (0, Coutp - Cout)).reshape(1, Coutp)
    beta_p = jnp.pad(beta.astype(jnp.float32), (0, Coutp - Cout)).reshape(1, Coutp)
    scale = gamma_p * lax.rsqrt(var + eps)
    shift = beta_p - mean * scale

    # ---- Pass 2: elementwise BN affine + ReLU (no GEMM / im2col recompute) --------------------
    out_flat = pl.pallas_call(
        functools.partial(_bn_relu_kernel, cout=Cout),
        grid=grid,
        in_specs=[pl.BlockSpec((TM, Coutp), lambda i: (i, 0)),
                  pl.BlockSpec((1, Coutp), lambda i: (0, 0)),
                  pl.BlockSpec((1, Coutp), lambda i: (0, 0))],
        out_specs=pl.BlockSpec((TM, Cout), lambda i: (i, 0)),
        out_shape=jax.ShapeDtypeStruct((Mp, Cout), jnp.float32),
        compiler_params=pltpu.CompilerParams(
            dimension_semantics=("parallel",),             # independent tiles (megacore on v7x)
            vmem_limit_bytes=vmem),
    )(y_conv, scale, shift)

    out = out_flat[:M].reshape(N, Ho, Wo, Cout)
    return jnp.transpose(out, (0, 3, 1, 2))                # NCHW
    # TODO(synk): for large Cin*KH*KW the wrapper im2col slab is KH*KW x the input in HBM;
    # switch to an in-kernel im2col with H-axis tiling (overlapping row windows) for such layers.


def _reference(x_nchw, w_oihw, gamma, beta, *, stride=1, padding=1, eps=1e-5):
    out = lax.conv_general_dilated(
        x_nchw.astype(jnp.float32), w_oihw.astype(jnp.float32),
        window_strides=(stride, stride),
        padding=((padding, padding), (padding, padding)),
        dimension_numbers=("NCHW", "OIHW", "NCHW"))
    mean = jnp.mean(out, axis=(0, 2, 3), keepdims=True)
    var = jnp.mean((out - mean) ** 2, axis=(0, 2, 3), keepdims=True)
    y = (out - mean) * lax.rsqrt(var + eps)
    y = y * gamma.reshape(1, -1, 1, 1) + beta.reshape(1, -1, 1, 1)
    return jnp.maximum(y, 0.0)


if __name__ == "__main__":
    key = jax.random.PRNGKey(0)
    kx, kw, kg, kb = jax.random.split(key, 4)

    # ConvBnReluLayer(inplanes=4, planes=8, kernel_size=3, padding=1, stride=1, bias=False)
    N, Cin, H, W = 2, 4, 16, 16
    Cout, Ksz, pad, stride = 8, 3, 1, 1

    x = jax.random.normal(kx, (N, Cin, H, W), jnp.float32)
    w = jax.random.normal(kw, (Cout, Cin, Ksz, Ksz), jnp.float32) * 0.1
    gamma = 1.0 + 0.1 * jax.random.normal(kg, (Cout,), jnp.float32)   # BN weight
    beta = 0.1 * jax.random.normal(kb, (Cout,), jnp.float32)          # BN bias

    out = jax.block_until_ready(
        conv_bn_relu(x, w, gamma, beta, stride=stride, padding=pad))
    ref = _reference(x, w, gamma, beta, stride=stride, padding=pad)

    assert out.shape == (N, Cout, H, W), out.shape
    # bf16 MXU operands + bf16 conv slab between passes vs. pure-f32 reference: tolerance loosened.
    assert bool(jnp.allclose(out, ref, atol=3e-2, rtol=3e-2)), "mismatch vs JAX reference"
    print("KERNEL_OK")
</pallas_src>

<mosaic_0001>
module attributes {stable_mosaic.version = 11 : i64} {
  func.func @_conv_stats_kernel(%arg0: i32, %arg1: memref<256x128xbf16, #tpu.memory_space<vmem>>, %arg2: memref<128x128xbf16, #tpu.memory_space<vmem>>, %arg3: memref<256x128xbf16, #tpu.memory_space<vmem>>, %arg4: memref<1x128xf32, #tpu.memory_space<vmem>>, %arg5: memref<1x128xf32, #tpu.memory_space<vmem>>) attributes {dimension_semantics = [#tpu.dimension_semantics<arbitrary>], iteration_bounds = array<i64: 2>, scalar_prefetch = 0 : i64, scratch_operands = 0 : i64, tpu.core_type = #tpu.core_type<tc>, window_params = [{transform_indices = @transform_0, window_bounds = array<i64: 256, 128>}, {pipeline_mode = #tpu.pipeline_mode<synchronous>, transform_indices = @transform_1, window_bounds = array<i64: 128, 128>}, {transform_indices = @transform_2, window_bounds = array<i64: 256, 128>}, {pipeline_mode = #tpu.pipeline_mode<synchronous>, transform_indices = @transform_3, window_bounds = array<i64: 1, 128>}, {pipeline_mode = #tpu.pipeline_mode<synchronous>, transform_indices = @transform_4, window_bounds = array<i64: 1, 128>}]} {
    %c0_i32 = arith.constant 0 : i32
    %0 = arith.cmpi eq, %arg0, %c0_i32 : i32
    %1 = arith.extui %0 : i1 to i32
    %c0_i32_0 = arith.constant 0 : i32
    %2 = arith.cmpi ne, %1, %c0_i32_0 : i32
    scf.if %2 {
      %cst_16 = arith.constant 0.000000e+00 : f32
      %19 = vector.broadcast %cst_16 : f32 to vector<1x128xf32>
      %c0_17 = arith.constant 0 : index
      %c0_18 = arith.constant 0 : index
      %20 = vector.load %arg4[%c0_17, %c0_18] : memref<1x128xf32, #tpu.memory_space<vmem>>, vector<1x128xf32>
      tpu.vector_store %arg4[%c0_17, %c0_18], %19 {strides = array<i32>} : memref<1x128xf32, #tpu.memory_space<vmem>>, vector<1x128xf32>,
      %cst_19 = arith.constant 0.000000e+00 : f32
      %21 = vector.broadcast %cst_19 : f32 to vector<1x128xf32>
      %c0_20 = arith.constant 0 : index
      %c0_21 = arith.constant 0 : index
      %22 = vector.load %arg5[%c0_20, %c0_21] : memref<1x128xf32, #tpu.memory_space<vmem>>, vector<1x128xf32>
      tpu.vector_store %arg5[%c0_20, %c0_21], %21 {strides = array<i32>} : memref<1x128xf32, #tpu.memory_space<vmem>>, vector<1x128xf32>,
    } else {
    }
    %c0 = arith.constant 0 : index
    %c0_1 = arith.constant 0 : index
    %3 = vector.load %arg1[%c0, %c0_1] : memref<256x128xbf16, #tpu.memory_space<vmem>>, vector<256x128xbf16>
    %c0_2 = arith.constant 0 : index
    %c0_3 = arith.constant 0 : index
    %4 = vector.load %arg2[%c0_2, %c0_3] : memref<128x128xbf16, #tpu.memory_space<vmem>>, vector<128x128xbf16>
    %cst = arith.constant dense<0.000000e+00> : vector<256x128xf32>
    %5 = tpu.matmul %3, %4, %cst {dimension_numbers = #tpu.dot_dimension_numbers<[1], [0], [0], [1], [0, 0, 1, 1], [], []>} : vector<256x128xbf16>, vector<128x128xbf16>, vector<256x128xf32> -> vector<256x128xf32>
    %6 = arith.truncf %5 : vector<256x128xf32> to vector<256x128xbf16>
    %c0_4 = arith.constant 0 : index
    %c0_5 = arith.constant 0 : index
    %7 = vector.load %arg3[%c0_4, %c0_5] : memref<256x128xbf16, #tpu.memory_space<vmem>>, vector<256x128xbf16>
    tpu.vector_store %arg3[%c0_4, %c0_5], %6 {strides = array<i32>} : memref<256x128xbf16, #tpu.memory_space<vmem>>, vector<256x128xbf16>,
    %c0_6 = arith.constant 0 : index
    %c0_7 = arith.constant 0 : index
    %8 = vector.load %arg4[%c0_6, %c0_7] : memref<1x128xf32, #tpu.memory_space<vmem>>, vector<1x128xf32>
    %cst_8 = arith.constant dense<0.000000e+00> : vector<128xf32>
    %9 = vector.multi_reduction <add>, %5, %cst_8 [0] : vector<256x128xf32> to vector<128xf32>
    %10 = vector.shape_cast %9 : vector<128xf32> to vector<1x128xf32>
    %11 = arith.addf %8, %10 : vector<1x128xf32>
    %c0_9 = arith.constant 0 : index
    %c0_10 = arith.constant 0 : index
    %12 = vector.load %arg4[%c0_9, %c0_10] : memref<1x128xf32, #tpu.memory_space<vmem>>, vector<1x128xf32>
    tpu.vector_store %arg4[%c0_9, %c0_10], %11 {strides = array<i32>} : memref<1x128xf32, #tpu.memory_space<vmem>>, vector<1x128xf32>,
    %c0_11 = arith.constant 0 : index
    %c0_12 = arith.constant 0 : index
    %13 = vector.load %arg5[%c0_11, %c0_12] : memref<1x128xf32, #tpu.memory_space<vmem>>, vector<1x128xf32>
    %14 = arith.mulf %5, %5 : vector<256x128xf32>
    %cst_13 = arith.constant dense<0.000000e+00> : vector<128xf32>
    %15 = vector.multi_reduction <add>, %14, %cst_13 [0] : vector<256x128xf32> to vector<128xf32>
    %16 = vector.shape_cast %15 : vector<128xf32> to vector<1x128xf32>
    %17 = arith.addf %13, %16 : vector<1x128xf32>
    %c0_14 = arith.constant 0 : index
    %c0_15 = arith.constant 0 : index
    %18 = vector.load %arg5[%c0_14, %c0_15] : memref<1x128xf32, #tpu.memory_space<vmem>>, vector<1x128xf32>
    tpu.vector_store %arg5[%c0_14, %c0_15], %17 {strides = array<i32>} : memref<1x128xf32, #tpu.memory_space<vmem>>, vector<1x128xf32>,
    return
  }
  func.func @transform_0(%arg0: i32) -> (i32, i32) {
    %c0_i32 = arith.constant 0 : i32
    %c0_i32_0 = arith.constant 0 : i32
    return %arg0, %c0_i32 : i32, i32
  }
  func.func @transform_1(%arg0: i32) -> (i32, i32) {
    %c0_i32 = arith.constant 0 : i32
    %c0_i32_0 = arith.constant 0 : i32
    %c0_i32_1 = arith.constant 0 : i32
    return %c0_i32, %c0_i32_0 : i32, i32
  }
  func.func @transform_2(%arg0: i32) -> (i32, i32) {
    %c0_i32 = arith.constant 0 : i32
    %c0_i32_0 = arith.constant 0 : i32
    return %arg0, %c0_i32 : i32, i32
  }
  func.func @transform_3(%arg0: i32) -> (i32, i32) {
    %c0_i32 = arith.constant 0 : i32
    %c0_i32_0 = arith.constant 0 : i32
    %c0_i32_1 = arith.constant 0 : i32
    return %c0_i32, %c0_i32_0 : i32, i32
  }
  func.func @transform_4(%arg0: i32) -> (i32, i32) {
    %c0_i32 = arith.constant 0 : i32
    %c0_i32_0 = arith.constant 0 : i32
    %c0_i32_1 = arith.constant 0 : i32
    return %c0_i32, %c0_i32_0 : i32, i32
  }
}

</mosaic_0001>

<llo_original>
// kernel: tpu_custom_call.1
$region0: #{tpu_custom_call.1}
  #allocation0 [shape = 'u32[]', space=smem, size = 0x4, offset = 0x4, fixed_abs, tag = 'smem constant byte address 0x4 - core index']
  #allocation1 [shape = 'u32[144,128]{1,0:T(1,128)}', space=vmem, size = 0x12000, scoped, tag = 'internal scratch']
  %s0 = inlined_call_operand.hbm [shape: bf16[512,128], index: 0, kind: input, shape index: {}]
  %s1 = inlined_call_operand.hbm [shape: bf16[128,128], index: 1, kind: input, shape index: {}]
  %s2 = inlined_call_operand.hbm [shape: bf16[512,128], index: 2, kind: output, shape index: {0}]
  %s3 = inlined_call_operand.hbm [shape: f32[1,128], index: 3, kind: output, shape index: {1}]
  %s4 = inlined_call_operand.hbm [shape: f32[1,128], index: 4, kind: output, shape index: {2}]
  %5 = xla_tuple %s2, %s3, %s4
  %s6 = sld [smem:[#allocation0]]
  $region69: #{tpu_custom_call.1} parent=0
    _
  %s8 = ssub.s32 1, %s6
  %s9 = scalar_select 0, %s8, %s6
  $region1: #{tpu_custom_call.1} parent=0
    #allocation2 [shape = 'u8[131072]{0}', space=vmem, size = 0x20000, scoped, tag = 'input window, operand 0']
    #allocation3 [shape = 's32[2]{0}', space=sflag, size = 0x8, scoped, tag = 'scoped memory for tpu_custom_call.1']
    #allocation4 [shape = 's32[2]{0}', space=sflag, size = 0x8, scoped, tag = 'scoped memory for tpu_custom_call.1']
    #allocation5 [shape = 'u8[32768]{0}', space=vmem, size = 0x8000, scoped, tag = 'input window, operand 1, single buffered']
    #allocation6 [shape = 's32[1]{0}', space=sflag, size = 0x4, scoped, tag = 'scoped memory for tpu_custom_call.1']
    #allocation7 [shape = 'u8[131072]{0}', space=vmem, size = 0x20000, scoped, tag = 'output window, operand 0']
    #allocation8 [shape = 'u8[512]{0}', space=vmem, size = 0x400, scoped, tag = 'output window, operand 1, single buffered']
    #allocation9 [shape = 's32[1]{0}', space=sflag, size = 0x4, scoped, tag = 'scoped memory for tpu_custom_call.1']
    #allocation10 [shape = 'u8[512]{0}', space=vmem, size = 0x400, scoped, tag = 'output window, operand 2, single buffered']
    %10 = vsyncpa [#allocation3], 0
    %s11 = scalar_lea.sflag [#allocation3], 1
    %12 = vsyncpa %s11, 0
    %13 = vsyncpa [#allocation6], 0
    %14 = vsyncpa [#allocation4], 0
    %s15 = scalar_lea.sflag [#allocation4], 1
    %16 = vsyncpa %s15, 0
    %17 = vsyncpa [#allocation9], 0
    loop: start=0, step=1, limit=4
    $region2: #{tpu_custom_call.1} parent=1 // loop_pre_header
      _
    $region3: #{tpu_custom_call.1} parent=1 // loop_header
      %s19 = sphi 0, %s23
      %p20 = scmp.ge.s32.totalorder %s19, 4
      %s29 = sphi 0, %s31
      %s32 = sphi 0, %s29
      %s33 = sphi 0, %s32
      %s49 = sphi 0, %s33
      %s53 = sphi 0, %s53
      %s55 = sphi 0, %s53
      %s56 = sphi 0, %s55
      %s70 = sphi 0, %s56
      %s76 = sphi 0, %s78
      %s79 = sphi 0, %s76
      %s80 = sphi 0, %s79
      %s96 = sphi 0, %s80
      %s100 = sphi 0, %s100
      %s102 = sphi 0, %s100
      %s103 = sphi 0, %s102
      %s117 = sphi 0, %s103
      %s121 = sphi 0, %s121
      %s123 = sphi 0, %s121
      %s124 = sphi 0, %s123
      %s138 = sphi 0, %s124
    $region4: #{tpu_custom_call.1} parent=1 // loop_header_branch
      %22 = sbr.rel (%p20) target = $region8
    $region5: #{tpu_custom_call.1} parent=1 // loop_body
      %s24 = ssub.s32 %s19, 1
      %s25 = ssub.s32 %s19, 2
      %s26 = sadd.s32 %s19, 1
      %s27 = ssub.s32 %s19, %s26
      %p28 = scmp.eq.s32.totalorder %s27, 0
      %s30 = sadd.s32 %s29, 1
      %s31 = scalar_select %p28, %s29, %s30
      %p34 = pneg %p28
      %p35 = scmp.eq.s32.totalorder %s19, 1
      %p36 = por %p34, %p35
      %p37 = scmp.ne.s32.totalorder %s29, %s32
      %p38 = scmp.eq.s32.totalorder %s19, 0
      %p39 = por %p37, %p38
      %p40 = scmp.ne.s32.totalorder %s29, %s32
      %p41 = scmp.eq.s32.totalorder %s24, 1
      %p42 = por %p40, %p41
      %p43 = scmp.ne.s32.totalorder %s32, %s33
      %p44 = scmp.eq.s32.totalorder %s24, 0
      %p45 = por %p43, %p44
      %p46 = scmp.ne.s32.totalorder %s32, %s33
      %p47 = scmp.eq.s32.totalorder %s25, 1
      %p48 = por %p46, %p47
      %p50 = scmp.ne.s32.totalorder %s33, %s49
      %p51 = scmp.eq.s32.totalorder %s25, 0
      %p52 = por %p50, %p51
      %s54 = sadd.s32 %s53, 1
      %p57 = scmp.eq.s32.totalorder %s19, 1
      %p58 = scmp.ne.s32.totalorder %s53, %s55
      %p59 = scmp.eq.s32.totalorder %s19, 0
      %p60 = por %p58, %p59
      %p61 = scmp.ne.s32.totalorder %s53, %s55
      %p62 = scmp.eq.s32.totalorder %s24, 1
      %p63 = por %p61, %p62
      %p64 = scmp.ne.s32.totalorder %s55, %s56
      %p65 = scmp.eq.s32.totalorder %s24, 0
      %p66 = por %p64, %p65
      %p67 = scmp.ne.s32.totalorder %s55, %s56
      %p68 = scmp.eq.s32.totalorder %s25, 1
      %p69 = por %p67, %p68
      %p71 = scmp.ne.s32.totalorder %s56, %s70
      %p72 = scmp.eq.s32.totalorder %s25, 0
      %p73 = por %p71, %p72
      %s74 = ssub.s32 %s19, %s26
      %p75 = scmp.eq.s32.totalorder %s74, 0
      %s77 = sadd.s32 %s76, 1
      %s78 = scalar_select %p75, %s76, %s77
      %p81 = pneg %p75
      %p82 = scmp.eq.s32.totalorder %s19, 1
      %p83 = por %p81, %p82
      %p84 = scmp.ne.s32.totalorder %s76, %s79
      %p85 = scmp.eq.s32.totalorder %s19, 0
      %p86 = por %p84, %p85
      %p87 = scmp.ne.s32.totalorder %s76, %s79
      %p88 = scmp.eq.s32.totalorder %s24, 1
      %p89 = por %p87, %p88
      %p90 = scmp.ne.s32.totalorder %s79, %s80
      %p91 = scmp.eq.s32.totalorder %s24, 0
      %p92 = por %p90, %p91
      %p93 = scmp.ne.s32.totalorder %s79, %s80
      %p94 = scmp.eq.s32.totalorder %s25, 1
      %p95 = por %p93, %p94
      %p97 = scmp.ne.s32.totalorder %s80, %s96
      %p98 = scmp.eq.s32.totalorder %s25, 0
      %p99 = por %p97, %p98
      %s101 = sadd.s32 %s100, 1
      %p104 = scmp.eq.s32.totalorder %s19, 1
      %p105 = scmp.ne.s32.totalorder %s100, %s102
      %p106 = scmp.eq.s32.totalorder %s19, 0
      %p107 = por %p105, %p106
      %p108 = scmp.ne.s32.totalorder %s100, %s102
      %p109 = scmp.eq.s32.totalorder %s24, 1
      %p110 = por %p108, %p109
      %p111 = scmp.ne.s32.totalorder %s102, %s103
      %p112 = scmp.eq.s32.totalorder %s24, 0
      %p113 = por %p111, %p112
      %p114 = scmp.ne.s32.totalorder %s102, %s103
      %p115 = scmp.eq.s32.totalorder %s25, 1
      %p116 = por %p114, %p115
      %p118 = scmp.ne.s32.totalorder %s103, %s117
      %p119 = scmp.eq.s32.totalorder %s25, 0
      %p120 = por %p118, %p119
      %s122 = sadd.s32 %s121, 1
      %p125 = scmp.eq.s32.totalorder %s19, 1
      %p126 = scmp.ne.s32.totalorder %s121, %s123
      %p127 = scmp.eq.s32.totalorder %s19, 0
      %p128 = por %p126, %p127
      %p129 = scmp.ne.s32.totalorder %s121, %s123
      %p130 = scmp.eq.s32.totalorder %s24, 1
      %p131 = por %p129, %p130
      %p132 = scmp.ne.s32.totalorder %s123, %s124
      %p133 = scmp.eq.s32.totalorder %s24, 0
      %p134 = por %p132, %p133
      %p135 = scmp.ne.s32.totalorder %s123, %s124
      %p136 = scmp.eq.s32.totalorder %s25, 1
      %p137 = por %p135, %p136
      %p139 = scmp.ne.s32.totalorder %s124, %s138
      %p140 = scmp.eq.s32.totalorder %s25, 0
      %p141 = por %p139, %p140
      %p142 = scmp.le.s32.totalorder 1, %s19
      %p143 = scmp.lt.s32.totalorder %s19, 3
      %p144 = pnand %p142, %p143
      %p145 = pneg %p144
      // Predicated region
      $region9: #{tpu_custom_call.1} parent=5 // pred_check
        _
      $region10: #{tpu_custom_call.1} parent=5 // pred_check_branch
        %147 = sbr.rel (%p144) target = $region12
      $region11: #{tpu_custom_call.1} parent=5 // pred_region
        %s148 = ssub.s32 %s19, 1
        // Predicated region
        $region13: #{tpu_custom_call.1} parent=11 // pred_check
          %p149 = pneg %p66
        $region14: #{tpu_custom_call.1} parent=11 // pred_check_branch
          %151 = sbr.rel (%p149) target = $region16
        $region15: #{tpu_custom_call.1} parent=11 // pred_region
          %s153 = ssub.s32 1024, 1024
          %154 = vsyncadd [#allocation6], %s153
          %s155 = sshll.u32 [#allocation5], 4
          %s156 = int_to_ptr.vmem [resolvable:$true] %s155
          %161 = dma.hbm_to_vmem [thread:$0]  %s1, 1024, %s156, [#allocation6], 64, 64, 4
        $region16: #{tpu_custom_call.1} parent=11 // pred_fallthru
          _
      $region12: #{tpu_custom_call.1} parent=5 // pred_fallthru
        _
      %p162 = scmp.lt.s32.totalorder %s19, 2
      // Predicated region
      $region17: #{tpu_custom_call.1} parent=5 // pred_check
        %p163 = pneg %p162
      $region18: #{tpu_custom_call.1} parent=5 // pred_check_branch
        %165 = sbr.rel (%p163) target = $region20
      $region19: #{tpu_custom_call.1} parent=5 // pred_region
        // Predicated region
        $region21: #{tpu_custom_call.1} parent=19 // pred_check
          %p166 = pneg %p39
        $region22: #{tpu_custom_call.1} parent=19 // pred_check_branch
          %168 = sbr.rel (%p166) target = $region24
        $region23: #{tpu_custom_call.1} parent=19 // pred_region
          %s169 = sand.u32 %s29, 1
          %s170 = scalar_lea.sflag [#allocation3], %s169
          %s171 = sand.u32 %s29, 1
          %s172 = smul.addr %s171, 128
          %s173 = scalar_lea.vmem [#allocation2], %s172
          %s174 = smul.u32 32, %s19
          %s176 = ssub.s32 2048, 2048
          %177 = vsyncadd %s170, %s176
          %s178 = smul.addr %s174, 64
          %s179 = scalar_lea.hbm %s0, %s178
          %s180 = sshll.u32 %s173, 4
          %s181 = int_to_ptr.vmem [resolvable:$true] %s180
          %186 = dma.hbm_to_vmem [thread:$0]  %s179, 2048, %s181, %s170, 64, 64, 4
        $region24: #{tpu_custom_call.1} parent=19 // pred_fallthru
          _
      $region20: #{tpu_custom_call.1} parent=5 // pred_fallthru
        _
      %p187 = scmp.le.s32.totalorder 1, %s19
      %p188 = scmp.lt.s32.totalorder %s19, 3
      %p189 = pnand %p187, %p188
      %p190 = pneg %p189
      // Predicated region
      $region25: #{tpu_custom_call.1} parent=5 // pred_check
        _
      $region26: #{tpu_custom_call.1} parent=5 // pred_check_branch
        %192 = sbr.rel (%p189) target = $region28
      $region27: #{tpu_custom_call.1} parent=5 // pred_region
        %s193 = ssub.s32 %s19, 1
        %s194 = sand.u32 %s32, 1
        %s195 = scalar_lea.sflag [#allocation3], %s194
        %s196 = sand.u32 %s32, 1
        %s197 = smul.addr %s196, 128
        %s198 = scalar_lea.vmem [#allocation2], %s197
        // Predicated region
        $region29: #{tpu_custom_call.1} parent=27 // pred_check
          %p199 = pneg %p45
        $region30: #{tpu_custom_call.1} parent=27 // pred_check_branch
          %201 = sbr.rel (%p199) target = $region32
        $region31: #{tpu_custom_call.1} parent=27 // pred_region
          %202 = dma.done %s195, 2048
        $region32: #{tpu_custom_call.1} parent=27 // pred_fallthru
          _
        // Predicated region
        $region33: #{tpu_custom_call.1} parent=27 // pred_check
          %p203 = pneg %p66
        $region34: #{tpu_custom_call.1} parent=27 // pred_check_branch
          %205 = sbr.rel (%p203) target = $region36
        $region35: #{tpu_custom_call.1} parent=27 // pred_region
          %206 = dma.done [#allocation6], 1024
        $region36: #{tpu_custom_call.1} parent=27 // pred_fallthru
          _
        %s207 = sand.u32 %s32, 1
        %s208 = scalar_lea.sflag [#allocation3], %s207
        %s209 = sand.u32 %s32, 1
        %s210 = smul.addr %s209, 128
        %s211 = scalar_lea.vmem [#allocation2], %s210
        %p212 = pneg %p45
        %p213 = pneg %p42
        %p214 = pneg %p66
        %p215 = pneg %p63
        %p216 = pneg %p92
        %p217 = pneg %p89
        %s218 = sand.u32 %s79, 1
        %s219 = scalar_lea.sflag [#allocation4], %s218
        %s220 = sand.u32 %s79, 1
        %s221 = smul.addr %s220, 128
        %s222 = scalar_lea.vmem [#allocation7], %s221
        %p223 = pneg %p113
        %p224 = pneg %p110
        %p225 = pneg %p134
        %p226 = pneg %p131
        %s227 = smul.u32 32, %s24
        %s228 = smul.u32 32, %s24
        %p230 = scmp.eq.s32.totalorder %s24, 0
        // Predicated region
        $region37: #{tpu_custom_call.1} parent=27 // pred_check
          %p231 = pneg %p230
        $region38: #{tpu_custom_call.1} parent=27 // pred_check_branch
          %233 = sbr.rel (%p231) target = $region40
        $region39: #{tpu_custom_call.1} parent=27 // pred_region
          %234 = vst [vmem:[#allocation8] sm:$0x1] 0.0
          %235 = vst [vmem:[#allocation10] sm:$0x1] 0.0
        $region40: #{tpu_custom_call.1} parent=27 // pred_fallthru
          _
        %v236 = vld [vmem:[%s198] sm:$0xf]
        %v237 = vld [vmem:[%s198 + $0x4] sm:$0xf]
        %v238 = vld [vmem:[%s198 + $0x8] sm:$0xf]
        %v239 = vld [vmem:[%s198 + $0xc] sm:$0xf]
        %v240 = vld [vmem:[%s198 + $0x10] sm:$0xf]
        %v241 = vld [vmem:[%s198 + $0x14] sm:$0xf]
        %v242 = vld [vmem:[%s198 + $0x18] sm:$0xf]
        %v243 = vld [vmem:[%s198 + $0x1c] sm:$0xf]
        %v244 = vld [vmem:[%s198 + $0x20] sm:$0xf]
        %v245 = vld [vmem:[%s198 + $0x24] sm:$0xf]
        %v246 = vld [vmem:[%s198 + $0x28] sm:$0xf]
        %v247 = vld [vmem:[%s198 + $0x2c] sm:$0xf]
        %v248 = vld [vmem:[%s198 + $0x30] sm:$0xf]
        %v249 = vld [vmem:[%s198 + $0x34] sm:$0xf]
        %v250 = vld [vmem:[%s198 + $0x38] sm:$0xf]
        %v251 = vld [vmem:[%s198 + $0x3c] sm:$0xf]
        %v252 = vld [vmem:[%s198 + $0x40] sm:$0xf]
        %v253 = vld [vmem:[%s198 + $0x44] sm:$0xf]
        %v254 = vld [vmem:[%s198 + $0x48] sm:$0xf]
        %v255 = vld [vmem:[%s198 + $0x4c] sm:$0xf]
        %v256 = vld [vmem:[%s198 + $0x50] sm:$0xf]
        %v257 = vld [vmem:[%s198 + $0x54] sm:$0xf]
        %v258 = vld [vmem:[%s198 + $0x58] sm:$0xf]
        %v259 = vld [vmem:[%s198 + $0x5c] sm:$0xf]
        %v260 = vld [vmem:[%s198 + $0x60] sm:$0xf]
        %v261 = vld [vmem:[%s198 + $0x64] sm:$0xf]
        %v262 = vld [vmem:[%s198 + $0x68] sm:$0xf]
        %v263 = vld [vmem:[%s198 + $0x6c] sm:$0xf]
        %v264 = vld [vmem:[%s198 + $0x70] sm:$0xf]
        %v265 = vld [vmem:[%s198 + $0x74] sm:$0xf]
        %v266 = vld [vmem:[%s198 + $0x78] sm:$0xf]
        %v267 = vld [vmem:[%s198 + $0x7c] sm:$0xf]
        %v268 = vld [vmem:[#allocation5] sm:$0xf]
        %v269 = vld [vmem:[#allocation5 + $0x4] sm:$0xf]
        %v270 = vld [vmem:[#allocation5 + $0x8] sm:$0xf]
        %v271 = vld [vmem:[#allocation5 + $0xc] sm:$0xf]
        %v272 = vld [vmem:[#allocation5 + $0x10] sm:$0xf]
        %v273 = vld [vmem:[#allocation5 + $0x14] sm:$0xf]
        %v274 = vld [vmem:[#allocation5 + $0x18] sm:$0xf]
        %v275 = vld [vmem:[#allocation5 + $0x1c] sm:$0xf]
        %v276 = vld [vmem:[#allocation5 + $0x20] sm:$0xf]
        %v277 = vld [vmem:[#allocation5 + $0x24] sm:$0xf]
        %v278 = vld [vmem:[#allocation5 + $0x28] sm:$0xf]
        %v279 = vld [vmem:[#allocation5 + $0x2c] sm:$0xf]
        %v280 = vld [vmem:[#allocation5 + $0x30] sm:$0xf]
        %v281 = vld [vmem:[#allocation5 + $0x34] sm:$0xf]
        %v282 = vld [vmem:[#allocation5 + $0x38] sm:$0xf]
        %v283 = vld [vmem:[#allocation5 + $0x3c] sm:$0xf]
        %v316 = vunpack.c.l.b16 %v236
        %v317 = vunpack.c.l.b16 %v237
        %v318 = vunpack.c.l.b16 %v238
        %v319 = vunpack.c.l.b16 %v239
        %v320 = vunpack.c.l.b16 %v240
        %v321 = vunpack.c.l.b16 %v241
        %v322 = vunpack.c.l.b16 %v242
        %v323 = vunpack.c.l.b16 %v243
        %v324 = vunpack.c.l.b16 %v244
        %v325 = vunpack.c.l.b16 %v245
        %v326 = vunpack.c.l.b16 %v246
        %v327 = vunpack.c.l.b16 %v247
        %v328 = vunpack.c.l.b16 %v248
        %v329 = vunpack.c.l.b16 %v249
        %v330 = vunpack.c.l.b16 %v250
        %v331 = vunpack.c.l.b16 %v251
        %v332 = vunpack.c.l.b16 %v252
        %v333 = vunpack.c.l.b16 %v253
        %v334 = vunpack.c.l.b16 %v254
        %v335 = vunpack.c.l.b16 %v255
        %v336 = vunpack.c.l.b16 %v256
        %v337 = vunpack.c.l.b16 %v257
        %v338 = vunpack.c.l.b16 %v258
        %v339 = vunpack.c.l.b16 %v259
        %v340 = vunpack.c.l.b16 %v260
        %v341 = vunpack.c.l.b16 %v261
        %v342 = vunpack.c.l.b16 %v262
        %v343 = vunpack.c.l.b16 %v263
        %v344 = vunpack.c.l.b16 %v264
        %v345 = vunpack.c.l.b16 %v265
        %v346 = vunpack.c.l.b16 %v266
        %v347 = vunpack.c.l.b16 %v267
        %v348 = vpack.c.b16 %v317, %v316
        %v349 = vpack.c.b16 %v319, %v318
        %v350 = vpack.c.b16 %v321, %v320
        %v351 = vpack.c.b16 %v323, %v322
        %v352 = vpack.c.b16 %v325, %v324
        %v353 = vpack.c.b16 %v327, %v326
        %v354 = vpack.c.b16 %v329, %v328
        %v355 = vpack.c.b16 %v331, %v330
        %v356 = vpack.c.b16 %v333, %v332
        %v357 = vpack.c.b16 %v335, %v334
        %v358 = vpack.c.b16 %v337, %v336
        %v359 = vpack.c.b16 %v339, %v338
        %v360 = vpack.c.b16 %v341, %v340
        %v361 = vpack.c.b16 %v343, %v342
        %v362 = vpack.c.b16 %v345, %v344
        %v363 = vpack.c.b16 %v347, %v346
        %v396 = vunpack.c.l.b16 %v268
        %v397 = vunpack.c.l.b16 %v269
        %v398 = vunpack.c.l.b16 %v270
        %v399 = vunpack.c.l.b16 %v271
        %v400 = vunpack.c.l.b16 %v272
        %v401 = vunpack.c.l.b16 %v273
        %v402 = vunpack.c.l.b16 %v274
        %v403 = vunpack.c.l.b16 %v275
        %v404 = vunpack.c.l.b16 %v276
        %v405 = vunpack.c.l.b16 %v277
        %v406 = vunpack.c.l.b16 %v278
        %v407 = vunpack.c.l.b16 %v279
        %v408 = vunpack.c.l.b16 %v280
        %v409 = vunpack.c.l.b16 %v281
        %v410 = vunpack.c.l.b16 %v282
        %v411 = vunpack.c.l.b16 %v283
        %v412 = vpack.c.b16 %v397, %v396
        %v413 = vpack.c.b16 %v399, %v398
        %v414 = vpack.c.b16 %v401, %v400
        %v415 = vpack.c.b16 %v403, %v402
        %v416 = vpack.c.b16 %v405, %v404
        %v417 = vpack.c.b16 %v407, %v406
        %v418 = vpack.c.b16 %v409, %v408
        %v419 = vpack.c.b16 %v411, %v410
        %428 = vmatprep.subr.bf16.mxu0 0
        %429 = vmatpush1.bf16.msra.mxu0 %v412
        %430 = vmatprep.subr.bf16.mxu0 0
        %431 = vmatpush1.bf16.msra.mxu0 %v413
        %432 = vmatprep.subr.bf16.mxu0 0
        %433 = vmatpush1.bf16.msra.mxu0 %v414
        %434 = vmatprep.subr.bf16.mxu0 0
        %435 = vmatpush1.bf16.msra.mxu0 %v415
        %436 = vmatprep.subr.bf16.mxu0 0
        %437 = vmatpush1.bf16.msra.mxu0 %v416
        %438 = vmatprep.subr.bf16.mxu0 0
        %439 = vmatpush1.bf16.msra.mxu0 %v417
        %440 = vmatprep.subr.bf16.mxu0 0
        %441 = vmatpush1.bf16.msra.mxu0 %v418
        %442 = vmatprep.subr.bf16.mxu0 0
        %443 = vmatpush1.bf16.msra.mxu0 %v419
        %444 = vmatprep.subr.bf16.mxu0 0
        %445 = vmatpush1.bf16.msra.mxu0 0
        %446 = vmatprep.subr.bf16.mxu0 0
        %447 = vmatpush1.bf16.msra.mxu0 0
        %448 = vmatprep.subr.bf16.mxu0 0
        %449 = vmatpush1.bf16.msra.mxu0 0
        %450 = vmatprep.subr.bf16.mxu0 0
        %451 = vmatpush1.bf16.msra.mxu0 0
        %452 = vmatprep.subr.bf16.mxu0 0
        %453 = vmatpush1.bf16.msra.mxu0 0
        %454 = vmatprep.subr.bf16.mxu0 0
        %455 = vmatpush1.bf16.msra.mxu0 0
        %456 = vmatprep.subr.bf16.mxu0 0
        %457 = vmatpush1.bf16.msra.mxu0 0
        %458 = vmatprep.subr.bf16.mxu0 0
        %459 = vmatpush1.bf16.msra.mxu0 0
        %460 = vmatprep.mubr.bf16.mxu0 0
        %461 = vmatmul.mubr.bf16.gmra.mrb[0].mxu0 %v348
        %v462 = vpop.f32.mrb[0].mxu0
        %v463 = vadd.f32 0.0, %v462
        %v464 = vpop.f32.mrb[0].mxu0
        %v465 = vpop.f32.mrb[0].mxu0
        %v466 = vadd.f32 0.0, %v465
        %v467 = vpop.f32.mrb[0].mxu0
        %468 = vmatprep.mubr.bf16.mxu0 0
        %469 = vmatmul.mubr.bf16.gmra.mrb[0].mxu0 %v349
        %v470 = vpop.f32.mrb[0].mxu0
        %v471 = vadd.f32 0.0, %v470
        %v472 = vpop.f32.mrb[0].mxu0
        %v473 = vpop.f32.mrb[0].mxu0
        %v474 = vadd.f32 0.0, %v473
        %v475 = vpop.f32.mrb[0].mxu0
        %476 = vmatprep.mubr.bf16.mxu0 0
        %477 = vmatmul.mubr.bf16.gmra.mrb[0].mxu0 %v350
        %v478 = vpop.f32.mrb[0].mxu0
        %v479 = vadd.f32 0.0, %v478
        %v480 = vpop.f32.mrb[0].mxu0
        %v481 = vpop.f32.mrb[0].mxu0
        %v482 = vadd.f32 0.0, %v481
        %v483 = vpop.f32.mrb[0].mxu0
        %484 = vmatprep.mubr.bf16.mxu0 0
        %485 = vmatmul.mubr.bf16.gmra.mrb[0].mxu0 %v351
        %v486 = vpop.f32.mrb[0].mxu0
        %v487 = vadd.f32 0.0, %v486
        %v488 = vpop.f32.mrb[0].mxu0
        %v489 = vpop.f32.mrb[0].mxu0
        %v490 = vadd.f32 0.0, %v489
        %v491 = vpop.f32.mrb[0].mxu0
        %492 = vmatprep.mubr.bf16.mxu0 0
        %493 = vmatmul.mubr.bf16.gmra.mrb[0].mxu0 %v352
        %v494 = vpop.f32.mrb[0].mxu0
        %v495 = vadd.f32 0.0, %v494
        %v496 = vpop.f32.mrb[0].mxu0
        %v497 = vpop.f32.mrb[0].mxu0
        %v498 = vadd.f32 0.0, %v497
        %v499 = vpop.f32.mrb[0].mxu0
        %500 = vmatprep.mubr.bf16.mxu0 0
        %501 = vmatmul.mubr.bf16.gmra.mrb[0].mxu0 %v353
        %v502 = vpop.f32.mrb[0].mxu0
        %v503 = vadd.f32 0.0, %v502
        %v504 = vpop.f32.mrb[0].mxu0
        %v505 = vpop.f32.mrb[0].mxu0
        %v506 = vadd.f32 0.0, %v505
        %v507 = vpop.f32.mrb[0].mxu0
        %508 = vmatprep.mubr.bf16.mxu0 0
        %509 = vmatmul.mubr.bf16.gmra.mrb[0].mxu0 %v354
        %v510 = vpop.f32.mrb[0].mxu0
        %v511 = vadd.f32 0.0, %v510
        %v512 = vpop.f32.mrb[0].mxu0
        %v513 = vpop.f32.mrb[0].mxu0
        %v514 = vadd.f32 0.0, %v513
        %v515 = vpop.f32.mrb[0].mxu0
        %516 = vmatprep.mubr.bf16.mxu0 0
        %517 = vmatmul.mubr.bf16.gmra.mrb[0].mxu0 %v355
        %v518 = vpop.f32.mrb[0].mxu0
        %v519 = vadd.f32 0.0, %v518
        %v520 = vpop.f32.mrb[0].mxu0
        %v521 = vpop.f32.mrb[0].mxu0
        %v522 = vadd.f32 0.0, %v521
        %v523 = vpop.f32.mrb[0].mxu0
        %524 = vmatprep.mubr.bf16.mxu0 0
        %525 = vmatmul.mubr.bf16.gmra.mrb[0].mxu0 %v356
        %v526 = vpop.f32.mrb[0].mxu0
        %v527 = vadd.f32 0.0, %v526
        %v528 = vpop.f32.mrb[0].mxu0
        %v529 = vpop.f32.mrb[0].mxu0
        %v530 = vadd.f32 0.0, %v529
        %v531 = vpop.f32.mrb[0].mxu0
        %532 = vmatprep.mubr.bf16.mxu0 0
        %533 = vmatmul.mubr.bf16.gmra.mrb[0].mxu0 %v357
        %v534 = vpop.f32.mrb[0].mxu0
        %v535 = vadd.f32 0.0, %v534
        %v536 = vpop.f32.mrb[0].mxu0
        %v537 = vpop.f32.mrb[0].mxu0
        %v538 = vadd.f32 0.0, %v537
        %v539 = vpop.f32.mrb[0].mxu0
        %540 = vmatprep.mubr.bf16.mxu0 0
        %541 = vmatmul.mubr.bf16.gmra.mrb[0].mxu0 %v358
        %v542 = vpop.f32.mrb[0].mxu0
        %v543 = vadd.f32 0.0, %v542
        %v544 = vpop.f32.mrb[0].mxu0
        %v545 = vpop.f32.mrb[0].mxu0
        %v546 = vadd.f32 0.0, %v545
        %v547 = vpop.f32.mrb[0].mxu0
        %548 = vmatprep.mubr.bf16.mxu0 0
        %549 = vmatmul.mubr.bf16.gmra.mrb[0].mxu0 %v359
        %v550 = vpop.f32.mrb[0].mxu0
        %v551 = vadd.f32 0.0, %v550
        %v552 = vpop.f32.mrb[0].mxu0
        %v553 = vpop.f32.mrb[0].mxu0
        %v554 = vadd.f32 0.0, %v553
        %v555 = vpop.f32.mrb[0].mxu0
        %556 = vmatprep.mubr.bf16.mxu0 0
        %557 = vmatmul.mubr.bf16.gmra.mrb[0].mxu0 %v360
        %v558 = vpop.f32.mrb[0].mxu0
        %v559 = vadd.f32 0.0, %v558
        %v560 = vpop.f32.mrb[0].mxu0
        %v561 = vpop.f32.mrb[0].mxu0
        %v562 = vadd.f32 0.0, %v561
        %v563 = vpop.f32.mrb[0].mxu0
        %564 = vmatprep.mubr.bf16.mxu0 0
        %565 = vmatmul.mubr.bf16.gmra.mrb[0].mxu0 %v361
        %v566 = vpop.f32.mrb[0].mxu0
        %v567 = vadd.f32 0.0, %v566
        %v568 = vpop.f32.mrb[0].mxu0
        %v569 = vpop.f32.mrb[0].mxu0
        %v570 = vadd.f32 0.0, %v569
        %v571 = vpop.f32.mrb[0].mxu0
        %572 = vmatprep.mubr.bf16.mxu0 0
        %573 = vmatmul.mubr.bf16.gmra.mrb[0].mxu0 %v362
        %v574 = vpop.f32.mrb[0].mxu0
        %v575 = vadd.f32 0.0, %v574
        %v576 = vpop.f32.mrb[0].mxu0
        %v577 = vpop.f32.mrb[0].mxu0
        %v578 = vadd.f32 0.0, %v577
        %v579 = vpop.f32.mrb[0].mxu0
        %580 = vmatprep.mubr.bf16.mxu0 0
        %581 = vmatmul.mubr.bf16.gmra.mrb[0].mxu0 %v363
        %v582 = vpop.f32.mrb[0].mxu0
        %v583 = vadd.f32 0.0, %v582
        %v584 = vpop.f32.mrb[0].mxu0
        %v585 = vpop.f32.mrb[0].mxu0
        %v586 = vadd.f32 0.0, %v585
        %v587 = vpop.f32.mrb[0].mxu0
        %588 = vdwg.mxu0
        %v589 = vpack.c.bf16 %v466, %v463
        %v590 = vpack.c.bf16 %v474, %v471
        %v591 = vpack.c.bf16 %v482, %v479
        %v592 = vpack.c.bf16 %v490, %v487
        %v593 = vpack.c.bf16 %v498, %v495
        %v594 = vpack.c.bf16 %v506, %v503
        %v595 = vpack.c.bf16 %v514, %v511
        %v596 = vpack.c.bf16 %v522, %v519
        %v597 = vpack.c.bf16 %v530, %v527
        %v598 = vpack.c.bf16 %v538, %v535
        %v599 = vpack.c.bf16 %v546, %v543
        %v600 = vpack.c.bf16 %v554, %v551
        %v601 = vpack.c.bf16 %v562, %v559
        %v602 = vpack.c.bf16 %v570, %v567
        %v603 = vpack.c.bf16 %v578, %v575
        %v604 = vpack.c.bf16 %v586, %v583
        %v621 = vunpack.c.l.b16 %v589
        %v622 = vunpack.c.h.b16 %v589
        %v623 = vunpack.c.l.b16 %v590
        %v624 = vunpack.c.h.b16 %v590
        %v625 = vunpack.c.l.b16 %v591
        %v626 = vunpack.c.h.b16 %v591
        %v627 = vunpack.c.l.b16 %v592
        %v628 = vunpack.c.h.b16 %v592
        %v629 = vunpack.c.l.b16 %v593
        %v630 = vunpack.c.h.b16 %v593
        %v631 = vunpack.c.l.b16 %v594
        %v632 = vunpack.c.h.b16 %v594
        %v633 = vunpack.c.l.b16 %v595
        %v634 = vunpack.c.h.b16 %v595
        %v635 = vunpack.c.l.b16 %v596
        %v636 = vunpack.c.h.b16 %v596
        %v637 = vunpack.c.l.b16 %v597
        %v638 = vunpack.c.h.b16 %v597
        %v639 = vunpack.c.l.b16 %v598
        %v640 = vunpack.c.h.b16 %v598
        %v641 = vunpack.c.l.b16 %v599
        %v642 = vunpack.c.h.b16 %v599
        %v643 = vunpack.c.l.b16 %v600
        %v644 = vunpack.c.h.b16 %v600
        %v645 = vunpack.c.l.b16 %v601
        %v646 = vunpack.c.h.b16 %v601
        %v647 = vunpack.c.l.b16 %v602
        %v648 = vunpack.c.h.b16 %v602
        %v649 = vunpack.c.l.b16 %v603
        %v650 = vunpack.c.h.b16 %v603
        %v651 = vunpack.c.l.b16 %v604
        %v652 = vunpack.c.h.b16 %v604
        %v653 = vpack.c.b16 %v621, %v621
        %v654 = vpack.c.b16 %v622, %v622
        %v655 = vpack.c.b16 %v623, %v623
        %v656 = vpack.c.b16 %v624, %v624
        %v657 = vpack.c.b16 %v625, %v625
        %v658 = vpack.c.b16 %v626, %v626
        %v659 = vpack.c.b16 %v627, %v627
        %v660 = vpack.c.b16 %v628, %v628
        %v661 = vpack.c.b16 %v629, %v629
        %v662 = vpack.c.b16 %v630, %v630
        %v663 = vpack.c.b16 %v631, %v631
        %v664 = vpack.c.b16 %v632, %v632
        %v665 = vpack.c.b16 %v633, %v633
        %v666 = vpack.c.b16 %v634, %v634
        %v667 = vpack.c.b16 %v635, %v635
        %v668 = vpack.c.b16 %v636, %v636
        %v669 = vpack.c.b16 %v637, %v637
        %v670 = vpack.c.b16 %v638, %v638
        %v671 = vpack.c.b16 %v639, %v639
        %v672 = vpack.c.b16 %v640, %v640
        %v673 = vpack.c.b16 %v641, %v641
        %v674 = vpack.c.b16 %v642, %v642
        %v675 = vpack.c.b16 %v643, %v643
        %v676 = vpack.c.b16 %v644, %v644
        %v677 = vpack.c.b16 %v645, %v645
        %v678 = vpack.c.b16 %v646, %v646
        %v679 = vpack.c.b16 %v647, %v647
        %v680 = vpack.c.b16 %v648, %v648
        %v681 = vpack.c.b16 %v649, %v649
        %v682 = vpack.c.b16 %v650, %v650
        %v683 = vpack.c.b16 %v651, %v651
        %v684 = vpack.c.b16 %v652, %v652
        %717 = vst [vmem:[%s222] sm:$0xf] %v653
        %718 = vst [vmem:[%s222 + $0x4] sm:$0xf] %v654
        %719 = vst [vmem:[%s222 + $0x8] sm:$0xf] %v655
        %720 = vst [vmem:[%s222 + $0xc] sm:$0xf] %v656
        %721 = vst [vmem:[%s222 + $0x10] sm:$0xf] %v657
        %722 = vst [vmem:[%s222 + $0x14] sm:$0xf] %v658
        %723 = vst [vmem:[%s222 + $0x18] sm:$0xf] %v659
        %724 = vst [vmem:[%s222 + $0x1c] sm:$0xf] %v660
        %725 = vst [vmem:[%s222 + $0x20] sm:$0xf] %v661
        %726 = vst [vmem:[%s222 + $0x24] sm:$0xf] %v662
        %727 = vst [vmem:[%s222 + $0x28] sm:$0xf] %v663
        %728 = vst [vmem:[%s222 + $0x2c] sm:$0xf] %v664
        %729 = vst [vmem:[%s222 + $0x30] sm:$0xf] %v665
        %730 = vst [vmem:[%s222 + $0x34] sm:$0xf] %v666
        %731 = vst [vmem:[%s222 + $0x38] sm:$0xf] %v667
        %732 = vst [vmem:[%s222 + $0x3c] sm:$0xf] %v668
        %733 = vst [vmem:[%s222 + $0x40] sm:$0xf] %v669
        %734 = vst [vmem:[%s222 + $0x44] sm:$0xf] %v670
        %735 = vst [vmem:[%s222 + $0x48] sm:$0xf] %v671
        %736 = vst [vmem:[%s222 + $0x4c] sm:$0xf] %v672
        %737 = vst [vmem:[%s222 + $0x50] sm:$0xf] %v673
        %738 = vst [vmem:[%s222 + $0x54] sm:$0xf] %v674
        %739 = vst [vmem:[%s222 + $0x58] sm:$0xf] %v675
        %740 = vst [vmem:[%s222 + $0x5c] sm:$0xf] %v676
        %741 = vst [vmem:[%s222 + $0x60] sm:$0xf] %v677
        %742 = vst [vmem:[%s222 + $0x64] sm:$0xf] %v678
        %743 = vst [vmem:[%s222 + $0x68] sm:$0xf] %v679
        %744 = vst [vmem:[%s222 + $0x6c] sm:$0xf] %v680
        %745 = vst [vmem:[%s222 + $0x70] sm:$0xf] %v681
        %746 = vst [vmem:[%s222 + $0x74] sm:$0xf] %v682
        %747 = vst [vmem:[%s222 + $0x78] sm:$0xf] %v683
        %748 = vst [vmem:[%s222 + $0x7c] sm:$0xf] %v684
        %v749 = vld [vmem:[#allocation8] sm:$0x1]
        %v750 = vadd.f32 %v463, %v466
        %v751 = vadd.f32 %v750, %v471
        %v752 = vadd.f32 %v751, %v474
        %v753 = vadd.f32 %v752, %v479
        %v754 = vadd.f32 %v753, %v482
        %v755 = vadd.f32 %v754, %v487
        %v756 = vadd.f32 %v755, %v490
        %v757 = vadd.f32 %v756, %v495
        %v758 = vadd.f32 %v757, %v498
        %v759 = vadd.f32 %v758, %v503
        %v760 = vadd.f32 %v759, %v506
        %v761 = vadd.f32 %v760, %v511
        %v762 = vadd.f32 %v761, %v514
        %v763 = vadd.f32 %v762, %v519
        %v764 = vadd.f32 %v763, %v522
        %v765 = vadd.f32 %v764, %v527
        %v766 = vadd.f32 %v765, %v530
        %v767 = vadd.f32 %v766, %v535
        %v768 = vadd.f32 %v767, %v538
        %v769 = vadd.f32 %v768, %v543
        %v770 = vadd.f32 %v769, %v546
        %v771 = vadd.f32 %v770, %v551
        %v772 = vadd.f32 %v771, %v554
        %v773 = vadd.f32 %v772, %v559
        %v774 = vadd.f32 %v773, %v562
        %v775 = vadd.f32 %v774, %v567
        %v776 = vadd.f32 %v775, %v570
        %v777 = vadd.f32 %v776, %v575
        %v778 = vadd.f32 %v777, %v578
        %v779 = vadd.f32 %v778, %v583
        %v780 = vadd.f32 %v779, %v586
        %v781 = vrot.slane %v780, 4
        %v782 = vadd.f32 %v780, %v781
        %v783 = vrot.slane %v782, 2
        %v784 = vadd.f32 %v782, %v783
        %v785 = vrot.slane %v784, 1
        %v786 = vadd.f32 %v784, %v785
        %v787 = vadd.f32 %v749, %v786
        %788 = vst [vmem:[#allocation8] sm:$0x1] %v787
        %v789 = vld [vmem:[#allocation10] sm:$0x1]
        %v790 = vmul.f32 %v463, %v463
        %v791 = vmul.f32 %v466, %v466
        %v792 = vmul.f32 %v471, %v471
        %v793 = vmul.f32 %v474, %v474
        %v794 = vmul.f32 %v479, %v479
        %v795 = vmul.f32 %v482, %v482
        %v796 = vmul.f32 %v487, %v487
        %v797 = vmul.f32 %v490, %v490
        %v798 = vmul.f32 %v495, %v495
        %v799 = vmul.f32 %v498, %v498
        %v800 = vmul.f32 %v503, %v503
        %v801 = vmul.f32 %v506, %v506
        %v802 = vmul.f32 %v511, %v511
        %v803 = vmul.f32 %v514, %v514
        %v804 = vmul.f32 %v519, %v519
        %v805 = vmul.f32 %v522, %v522
        %v806 = vmul.f32 %v527, %v527
        %v807 = vmul.f32 %v530, %v530
        %v808 = vmul.f32 %v535, %v535
        %v809 = vmul.f32 %v538, %v538
        %v810 = vmul.f32 %v543, %v543
        %v811 = vmul.f32 %v546, %v546
        %v812 = vmul.f32 %v551, %v551
        %v813 = vmul.f32 %v554, %v554
        %v814 = vmul.f32 %v559, %v559
        %v815 = vmul.f32 %v562, %v562
        %v816 = vmul.f32 %v567, %v567
        %v817 = vmul.f32 %v570, %v570
        %v818 = vmul.f32 %v575, %v575
        %v819 = vmul.f32 %v578, %v578
        %v820 = vmul.f32 %v583, %v583
        %v821 = vmul.f32 %v586, %v586
        %v822 = vadd.f32 %v790, %v791
        %v823 = vadd.f32 %v822, %v792
        %v824 = vadd.f32 %v823, %v793
        %v825 = vadd.f32 %v824, %v794
        %v826 = vadd.f32 %v825, %v795
        %v827 = vadd.f32 %v826, %v796
        %v828 = vadd.f32 %v827, %v797
        %v829 = vadd.f32 %v828, %v798
        %v830 = vadd.f32 %v829, %v799
        %v831 = vadd.f32 %v830, %v800
        %v832 = vadd.f32 %v831, %v801
        %v833 = vadd.f32 %v832, %v802
        %v834 = vadd.f32 %v833, %v803
        %v835 = vadd.f32 %v834, %v804
        %v836 = vadd.f32 %v835, %v805
        %v837 = vadd.f32 %v836, %v806
        %v838 = vadd.f32 %v837, %v807
        %v839 = vadd.f32 %v838, %v808
        %v840 = vadd.f32 %v839, %v809
        %v841 = vadd.f32 %v840, %v810
        %v842 = vadd.f32 %v841, %v811
        %v843 = vadd.f32 %v842, %v812
        %v844 = vadd.f32 %v843, %v813
        %v845 = vadd.f32 %v844, %v814
        %v846 = vadd.f32 %v845, %v815
        %v847 = vadd.f32 %v846, %v816
        %v848 = vadd.f32 %v847, %v817
        %v849 = vadd.f32 %v848, %v818
        %v850 = vadd.f32 %v849, %v819
        %v851 = vadd.f32 %v850, %v820
        %v852 = vadd.f32 %v851, %v821
        %v853 = vrot.slane %v852, 4
        %v854 = vadd.f32 %v852, %v853
        %v855 = vrot.slane %v854, 2
        %v856 = vadd.f32 %v854, %v855
        %v857 = vrot.slane %v856, 1
        %v858 = vadd.f32 %v856, %v857
        %v859 = vadd.f32 %v789, %v858
        %860 = vst [vmem:[#allocation10] sm:$0x1] %v859
        %s861 = sand.u32 %s79, 1
        %s862 = scalar_lea.sflag [#allocation4], %s861
        %s863 = sand.u32 %s79, 1
        %s864 = smul.addr %s863, 128
        %s865 = scalar_lea.vmem [#allocation7], %s864
        // Predicated region
        $region41: #{tpu_custom_call.1} parent=27 // pred_check
          %p866 = pneg %p89
        $region42: #{tpu_custom_call.1} parent=27 // pred_check_branch
          %868 = sbr.rel (%p866) target = $region44
        $region43: #{tpu_custom_call.1} parent=27 // pred_region
          %s869 = smul.u32 32, %s24
          %s871 = ssub.s32 2048, 2048
          %872 = vsyncadd %s862, %s871
          %s873 = smul.addr %s869, 64
          %s874 = scalar_lea.hbm %s2, %s873
          %s875 = sshll.u32 %s865, 4
          %s876 = int_to_ptr.vmem [resolvable:$true] %s875
          %881 = dma.vmem_to_hbm [thread:$0]  %s876, 2048, %s874, %s862, 64, 64, 4
        $region44: #{tpu_custom_call.1} parent=27 // pred_fallthru
          _
        // Predicated region
        $region45: #{tpu_custom_call.1} parent=27 // pred_check
          %p882 = pneg %p110
        $region46: #{tpu_custom_call.1} parent=27 // pred_check_branch
          %884 = sbr.rel (%p882) target = $region48
        $region47: #{tpu_custom_call.1} parent=27 // pred_region
          %s886 = ssub.s32 16, 16
          %887 = vsyncadd [#allocation9], %s886
          %s889 = sshll.u32 [#allocation8], 4
          %s890 = int_to_ptr.vmem [resolvable:$true] %s889
          %892 = dma.vmem_to_hbm [thread:$0]  %s890, 16, %s3, [#allocation9]
        $region48: #{tpu_custom_call.1} parent=27 // pred_fallthru
          _
        // Predicated region
        $region49: #{tpu_custom_call.1} parent=27 // pred_check
          %p893 = pneg %p131
        $region50: #{tpu_custom_call.1} parent=27 // pred_check_branch
          %895 = sbr.rel (%p893) target = $region52
        $region51: #{tpu_custom_call.1} parent=27 // pred_region
          %s897 = ssub.s32 16, 16
          %898 = vsyncadd [#allocation9], %s897
          %s900 = sshll.u32 [#allocation10], 4
          %s901 = int_to_ptr.vmem [resolvable:$true] %s900
          %903 = dma.vmem_to_hbm [thread:$0]  %s901, 16, %s4, [#allocation9]
        $region52: #{tpu_custom_call.1} parent=27 // pred_fallthru
          _
        // Predicated region
        $region53: #{tpu_custom_call.1} parent=27 // pred_check
          %p904 = pneg %p110
        $region54: #{tpu_custom_call.1} parent=27 // pred_check_branch
          %906 = sbr.rel (%p904) target = $region56
        $region55: #{tpu_custom_call.1} parent=27 // pred_region
          %907 = dma.done [#allocation9], 16
        $region56: #{tpu_custom_call.1} parent=27 // pred_fallthru
          _
        // Predicated region
        $region57: #{tpu_custom_call.1} parent=27 // pred_check
          %p908 = pneg %p131
        $region58: #{tpu_custom_call.1} parent=27 // pred_check_branch
          %910 = sbr.rel (%p908) target = $region60
        $region59: #{tpu_custom_call.1} parent=27 // pred_region
          %911 = dma.done [#allocation9], 16
        $region60: #{tpu_custom_call.1} parent=27 // pred_fallthru
          _
      $region28: #{tpu_custom_call.1} parent=5 // pred_fallthru
        _
      %p912 = scmp.le.s32.totalorder 2, %s19
      // Predicated region
      $region61: #{tpu_custom_call.1} parent=5 // pred_check
        %p913 = pneg %p912
      $region62: #{tpu_custom_call.1} parent=5 // pred_check_branch
        %915 = sbr.rel (%p913) target = $region64
      $region63: #{tpu_custom_call.1} parent=5 // pred_region
        %s916 = ssub.s32 %s19, 2
        // Predicated region
        $region65: #{tpu_custom_call.1} parent=63 // pred_check
          %p917 = pneg %p95
        $region66: #{tpu_custom_call.1} parent=63 // pred_check_branch
          %919 = sbr.rel (%p917) target = $region68
        $region67: #{tpu_custom_call.1} parent=63 // pred_region
          %s920 = sand.u32 %s80, 1
          %s921 = scalar_lea.sflag [#allocation4], %s920
          %s922 = sand.u32 %s80, 1
          %s923 = smul.addr %s922, 128
          %s924 = scalar_lea.vmem [#allocation7], %s923
          %925 = dma.done %s921, 2048
        $region68: #{tpu_custom_call.1} parent=63 // pred_fallthru
          _
      $region64: #{tpu_custom_call.1} parent=5 // pred_fallthru
        _
    $region6: #{tpu_custom_call.1} parent=1 // loop_footer
      %s23 = sadd.s32 1, %s19
    $region7: #{tpu_custom_call.1} parent=1 // loop_footer_branch
      %18 = sbr.rel target = $region3
    $region8: #{tpu_custom_call.1} parent=1 // loop_exit
      _
    %926 = vsyncpa [#allocation3], 1
    %s927 = scalar_lea.sflag [#allocation3], 1
    %928 = vsyncpa %s927, 1
    %929 = vsyncpa [#allocation6], 1
    %930 = vsyncpa [#allocation4], 1
    %s931 = scalar_lea.sflag [#allocation4], 1
    %932 = vsyncpa %s931, 1
    %933 = vsyncpa [#allocation9], 1

</llo_original>
